<compile_context>
chip_gen: v7x
topology: tpu7x:2x2x1
jax: 0.10.0
libtpu: 0.0.40
codegen_flags: <defaults>
</compile_context>

<pallas_src>
import functools

import jax
import jax.numpy as jnp
from jax import lax
from jax.experimental import pallas as pl
from jax.experimental.pallas import tpu as pltpu


def _conv1d_relu_kernel(x_ref, w_ref, b_ref, out_ref, *, stride):
    """One batch element: out[0] = relu(conv1d(x[0], w) + b).

    x_ref:   (1, C_in, L_pad)   already zero-padded input
    w_ref:   (K, C_out, C_in)   tap-major weight layout
    b_ref:   (C_out, 1)
    out_ref: (1, C_out, L_out)
    """
    _, c_in, _ = x_ref.shape
    k_sz = w_ref.shape[0]
    c_out, l_out = out_ref.shape[1], out_ref.shape[2]

    xb = x_ref[0]                                     # (C_in, L_pad)

    # Accumulate in registers; static Python loop over taps -> fully unrolled.
    acc = jnp.zeros((c_out, l_out), jnp.float32)
    for k in range(k_sz):
        if stride == 1:
            xk = xb[:, k:k + l_out]                   # (C_in, L_out)
        else:
            xk = lax.slice(xb, (0, k),
                           (c_in, k + stride * (l_out - 1) + 1),
                           (1, stride))
        acc = acc + jnp.dot(w_ref[k], xk,             # (C_out,C_in)@(C_in,L_out)
                            preferred_element_type=jnp.float32)

    # Bias + ReLU applied once; single lane-dense (C_out, L_out) store.
    out_ref[0] = jnp.maximum(acc + b_ref[...], 0.0)


def conv1d_relu(x, w, b, *, stride=1, padding=0):
    """x: (B, C_in, L), w: (C_out, C_in, K), b: (C_out,) -> (B, C_out, L_out)."""
    B, C_in, L = x.shape
    C_out, C_in_w, K = w.shape
    assert C_in == C_in_w
    L_out = (L + 2 * padding - K) // stride + 1
    assert L_out > 0

    if padding:
        x = jnp.pad(x, ((0, 0), (0, 0), (padding, padding)))
    L_pad = L + 2 * padding

    w_stack = jnp.transpose(w, (2, 0, 1))             # (K, C_out, C_in)
    b_col = b.reshape(C_out, 1)

    kernel = functools.partial(_conv1d_relu_kernel, stride=stride)
    return pl.pallas_call(
        kernel,
        out_shape=jax.ShapeDtypeStruct((B, C_out, L_out), jnp.float32),
        grid=(B,),
        in_specs=[
            pl.BlockSpec((1, C_in, L_pad), lambda i: (i, 0, 0)),
            pl.BlockSpec((K, C_out, C_in), lambda i: (0, 0, 0)),
            pl.BlockSpec((C_out, 1), lambda i: (0, 0)),
        ],
        out_specs=pl.BlockSpec((1, C_out, L_out), lambda i: (i, 0, 0)),
        compiler_params=pltpu.CompilerParams(
            dimension_semantics=("parallel",)),
    )(x, w_stack, b_col)


# ---------------- pure-JAX reference (correctness check) ----------------
def _ref_conv1d_relu(x, w, b, *, stride=1, padding=0):
    y = lax.conv_general_dilated(
        x, w, window_strides=(stride,), padding=[(padding, padding)],
        dimension_numbers=("NCH", "OIH", "NCH"))
    return jax.nn.relu(y + b.reshape(1, -1, 1))


if __name__ == "__main__":
    key = jax.random.PRNGKey(0)

    configs = [
        # (B, C_in, C_out(nKernel), kernelSz, L, stride, padding)
        dict(B=2, C_in=4, C_out=3, K=3, L=16, stride=1, padding=0),
        dict(B=2, C_in=4, C_out=8, K=5, L=16, stride=1, padding=2),
    ]

    for idx, cfg in enumerate(configs):
        kx, kw, kb, key = jax.random.split(key, 4)
        fan = cfg["C_in"] * cfg["K"]
        bound = 1.0 / (float(fan) ** 0.5)

        x = jax.random.normal(kx, (cfg["B"], cfg["C_in"], cfg["L"]), jnp.float32)
        w = jax.random.uniform(kw, (cfg["C_out"], cfg["C_in"], cfg["K"]),
                               jnp.float32, -bound, bound)
        b = jax.random.uniform(kb, (cfg["C_out"],), jnp.float32, -bound, bound)

        run = jax.jit(conv1d_relu, static_argnames=("stride", "padding"))
        out = jax.block_until_ready(
            run(x, w, b, stride=cfg["stride"], padding=cfg["padding"]))

        ref = _ref_conv1d_relu(x, w, b, stride=cfg["stride"],
                               padding=cfg["padding"])
        assert out.shape == ref.shape, f"shape mismatch in config {idx}"
        assert jnp.allclose(out, ref, atol=1e-5, rtol=1e-5), \
            f"mismatch vs reference in config {idx}"

    print("KERNEL_OK")
</pallas_src>

<mosaic_0001>
module attributes {stable_mosaic.version = 11 : i64} {
  func.func @_conv1d_relu_kernel(%arg0: i32, %arg1: memref<1x4x16xf32, #tpu.memory_space<vmem>>, %arg2: memref<3x3x4xf32, #tpu.memory_space<vmem>>, %arg3: memref<3x1xf32, #tpu.memory_space<vmem>>, %arg4: memref<1x3x14xf32, #tpu.memory_space<vmem>>) attributes {dimension_semantics = [#tpu.dimension_semantics<parallel>], iteration_bounds = array<i64: 2>, scalar_prefetch = 0 : i64, scratch_operands = 0 : i64, tpu.core_type = #tpu.core_type<tc>, window_params = [{transform_indices = @transform_0, window_bounds = array<i64: 1, 4, 16>}, {pipeline_mode = #tpu.pipeline_mode<synchronous>, transform_indices = @transform_1, window_bounds = array<i64: 3, 3, 4>}, {pipeline_mode = #tpu.pipeline_mode<synchronous>, transform_indices = @transform_2, window_bounds = array<i64: 3, 1>}, {transform_indices = @transform_3, window_bounds = array<i64: 1, 3, 14>}]} {
    %c0 = arith.constant 0 : index
    %c0_0 = arith.constant 0 : index
    %c0_1 = arith.constant 0 : index
    %0 = vector.load %arg1[%c0, %c0_0, %c0_1] : memref<1x4x16xf32, #tpu.memory_space<vmem>>, vector<1x4x16xf32>
    %1 = vector.shape_cast %0 : vector<1x4x16xf32> to vector<4x16xf32>
    %cst = arith.constant 0.000000e+00 : f32
    %2 = vector.broadcast %cst : f32 to vector<3x14xf32>
    %3 = vector.extract_strided_slice %1 {offsets = [0, 0], sizes = [4, 14], strides = [1, 1]} : vector<4x16xf32> to vector<4x14xf32>
    %c0_2 = arith.constant 0 : index
    %c0_3 = arith.constant 0 : index
    %c0_4 = arith.constant 0 : index
    %4 = vector.load %arg2[%c0_2, %c0_3, %c0_4] : memref<3x3x4xf32, #tpu.memory_space<vmem>>, vector<1x3x4xf32>
    %5 = vector.shape_cast %4 : vector<1x3x4xf32> to vector<3x4xf32>
    %cst_5 = arith.constant dense<0.000000e+00> : vector<3x14xf32>
    %6 = tpu.matmul %5, %3, %cst_5 {dimension_numbers = #tpu.dot_dimension_numbers<[1], [0], [0], [1], [0, 0, 1, 1], [], []>} : vector<3x4xf32>, vector<4x14xf32>, vector<3x14xf32> -> vector<3x14xf32>
    %7 = arith.addf %2, %6 : vector<3x14xf32>
    %8 = vector.extract_strided_slice %1 {offsets = [0, 1], sizes = [4, 14], strides = [1, 1]} : vector<4x16xf32> to vector<4x14xf32>
    %c1 = arith.constant 1 : index
    %c0_6 = arith.constant 0 : index
    %c0_7 = arith.constant 0 : index
    %9 = vector.load %arg2[%c1, %c0_6, %c0_7] : memref<3x3x4xf32, #tpu.memory_space<vmem>>, vector<1x3x4xf32>
    %10 = vector.shape_cast %9 : vector<1x3x4xf32> to vector<3x4xf32>
    %cst_8 = arith.constant dense<0.000000e+00> : vector<3x14xf32>
    %11 = tpu.matmul %10, %8, %cst_8 {dimension_numbers = #tpu.dot_dimension_numbers<[1], [0], [0], [1], [0, 0, 1, 1], [], []>} : vector<3x4xf32>, vector<4x14xf32>, vector<3x14xf32> -> vector<3x14xf32>
    %12 = arith.addf %7, %11 : vector<3x14xf32>
    %13 = vector.extract_strided_slice %1 {offsets = [0, 2], sizes = [4, 14], strides = [1, 1]} : vector<4x16xf32> to vector<4x14xf32>
    %c2 = arith.constant 2 : index
    %c0_9 = arith.constant 0 : index
    %c0_10 = arith.constant 0 : index
    %14 = vector.load %arg2[%c2, %c0_9, %c0_10] : memref<3x3x4xf32, #tpu.memory_space<vmem>>, vector<1x3x4xf32>
    %15 = vector.shape_cast %14 : vector<1x3x4xf32> to vector<3x4xf32>
    %cst_11 = arith.constant dense<0.000000e+00> : vector<3x14xf32>
    %16 = tpu.matmul %15, %13, %cst_11 {dimension_numbers = #tpu.dot_dimension_numbers<[1], [0], [0], [1], [0, 0, 1, 1], [], []>} : vector<3x4xf32>, vector<4x14xf32>, vector<3x14xf32> -> vector<3x14xf32>
    %17 = arith.addf %12, %16 : vector<3x14xf32>
    %c0_12 = arith.constant 0 : index
    %c0_13 = arith.constant 0 : index
    %18 = vector.load %arg3[%c0_12, %c0_13] : memref<3x1xf32, #tpu.memory_space<vmem>>, vector<3x1xf32>
    %19 = vector.broadcast %18 : vector<3x1xf32> to vector<3x14xf32>
    %20 = arith.addf %17, %19 : vector<3x14xf32>
    %cst_14 = arith.constant 0.000000e+00 : f32
    %21 = vector.broadcast %cst_14 : f32 to vector<3x14xf32>
    %22 = arith.maximumf %20, %21 : vector<3x14xf32>
    %c0_15 = arith.constant 0 : index
    %c0_16 = arith.constant 0 : index
    %c0_17 = arith.constant 0 : index
    %23 = vector.load %arg4[%c0_15, %c0_16, %c0_17] : memref<1x3x14xf32, #tpu.memory_space<vmem>>, vector<1x3x14xf32>
    %24 = vector.shape_cast %23 : vector<1x3x14xf32> to vector<3x14xf32>
    %25 = vector.shape_cast %22 : vector<3x14xf32> to vector<1x3x14xf32>
    tpu.vector_store %arg4[%c0_15, %c0_16, %c0_17], %25 {strides = array<i32>} : memref<1x3x14xf32, #tpu.memory_space<vmem>>, vector<1x3x14xf32>,
    return
  }
  func.func @transform_0(%arg0: i32) -> (i32, i32, i32) {
    %c0_i32 = arith.constant 0 : i32
    %c0_i32_0 = arith.constant 0 : i32
    %c0_i32_1 = arith.constant 0 : i32
    return %arg0, %c0_i32, %c0_i32_0 : i32, i32, i32
  }
  func.func @transform_1(%arg0: i32) -> (i32, i32, i32) {
    %c0_i32 = arith.constant 0 : i32
    %c0_i32_0 = arith.constant 0 : i32
    %c0_i32_1 = arith.constant 0 : i32
    %c0_i32_2 = arith.constant 0 : i32
    return %c0_i32, %c0_i32_0, %c0_i32_1 : i32, i32, i32
  }
  func.func @transform_2(%arg0: i32) -> (i32, i32) {
    %c0_i32 = arith.constant 0 : i32
    %c0_i32_0 = arith.constant 0 : i32
    %c0_i32_1 = arith.constant 0 : i32
    return %c0_i32, %c0_i32_0 : i32, i32
  }
  func.func @transform_3(%arg0: i32) -> (i32, i32, i32) {
    %c0_i32 = arith.constant 0 : i32
    %c0_i32_0 = arith.constant 0 : i32
    %c0_i32_1 = arith.constant 0 : i32
    return %arg0, %c0_i32, %c0_i32_0 : i32, i32, i32
  }
}

</mosaic_0001>

<llo_original>
// kernel: conv1d_relu.1
$region0: #{conv1d_relu.1}
  #allocation0 [shape = 'u32[]', space=smem, size = 0x4, offset = 0x4, fixed_abs, tag = 'smem constant byte address 0x4 - core index']
  #allocation1 [shape = 'u32[144,128]{1,0:T(1,128)}', space=vmem, size = 0x12000, scoped, tag = 'internal scratch']
  %s0 = inlined_call_operand.vmem [shape: f32[2,4,16], index: 0, kind: input, shape index: {}]
  %s1 = inlined_call_operand.vmem [shape: f32[3,3,4], index: 1, kind: input, shape index: {}]
  %s2 = inlined_call_operand.vmem [shape: f32[3,1], index: 2, kind: input, shape index: {}]
  %s3 = inlined_call_operand.vmem [shape: f32[2,3,14], index: 3, kind: output, shape index: {}]
  %s4 = sld [smem:[#allocation0]]
  $region45: #{conv1d_relu.1} parent=0
    _
  %s6 = ssub.s32 1, %s4
  %s7 = scalar_select 0, %s6, %s4
  loop: start=0, step=1, limit=4
  $region2: #{conv1d_relu.1} parent=0 // loop_pre_header
    _
  $region3: #{conv1d_relu.1} parent=0 // loop_header
    %s9 = sphi 0, %s13
    %p10 = scmp.ge.s32.totalorder %s9, 4
    %s19 = sphi 0, %s21
    %s22 = sphi 0, %s19
    %s23 = sphi 0, %s22
    %s39 = sphi 0, %s23
    %s43 = sphi 0, %s43
    %s45 = sphi 0, %s43
    %s46 = sphi 0, %s45
    %s60 = sphi 0, %s46
    %s64 = sphi 0, %s64
    %s66 = sphi 0, %s64
    %s67 = sphi 0, %s66
    %s81 = sphi 0, %s67
    %s87 = sphi 0, %s89
    %s90 = sphi 0, %s87
    %s91 = sphi 0, %s90
    %s107 = sphi 0, %s91
  $region4: #{conv1d_relu.1} parent=0 // loop_header_branch
    %12 = sbr.rel (%p10) target = $region8
  $region5: #{conv1d_relu.1} parent=0 // loop_body
    %s14 = ssub.s32 %s9, 1
    %s15 = ssub.s32 %s9, 2
    %s16 = sadd.s32 %s9, 1
    %s17 = ssub.s32 %s9, %s16
    %p18 = scmp.eq.s32.totalorder %s17, 0
    %s20 = sadd.s32 %s19, 1
    %s21 = scalar_select %p18, %s19, %s20
    %p24 = pneg %p18
    %p25 = scmp.eq.s32.totalorder %s9, 1
    %p26 = por %p24, %p25
    %p27 = scmp.ne.s32.totalorder %s19, %s22
    %p28 = scmp.eq.s32.totalorder %s9, 0
    %p29 = por %p27, %p28
    %p30 = scmp.ne.s32.totalorder %s19, %s22
    %p31 = scmp.eq.s32.totalorder %s14, 1
    %p32 = por %p30, %p31
    %p33 = scmp.ne.s32.totalorder %s22, %s23
    %p34 = scmp.eq.s32.totalorder %s14, 0
    %p35 = por %p33, %p34
    %p36 = scmp.ne.s32.totalorder %s22, %s23
    %p37 = scmp.eq.s32.totalorder %s15, 1
    %p38 = por %p36, %p37
    %p40 = scmp.ne.s32.totalorder %s23, %s39
    %p41 = scmp.eq.s32.totalorder %s15, 0
    %p42 = por %p40, %p41
    %s44 = sadd.s32 %s43, 1
    %p47 = scmp.eq.s32.totalorder %s9, 1
    %p48 = scmp.ne.s32.totalorder %s43, %s45
    %p49 = scmp.eq.s32.totalorder %s9, 0
    %p50 = por %p48, %p49
    %p51 = scmp.ne.s32.totalorder %s43, %s45
    %p52 = scmp.eq.s32.totalorder %s14, 1
    %p53 = por %p51, %p52
    %p54 = scmp.ne.s32.totalorder %s45, %s46
    %p55 = scmp.eq.s32.totalorder %s14, 0
    %p56 = por %p54, %p55
    %p57 = scmp.ne.s32.totalorder %s45, %s46
    %p58 = scmp.eq.s32.totalorder %s15, 1
    %p59 = por %p57, %p58
    %p61 = scmp.ne.s32.totalorder %s46, %s60
    %p62 = scmp.eq.s32.totalorder %s15, 0
    %p63 = por %p61, %p62
    %s65 = sadd.s32 %s64, 1
    %p68 = scmp.eq.s32.totalorder %s9, 1
    %p69 = scmp.ne.s32.totalorder %s64, %s66
    %p70 = scmp.eq.s32.totalorder %s9, 0
    %p71 = por %p69, %p70
    %p72 = scmp.ne.s32.totalorder %s64, %s66
    %p73 = scmp.eq.s32.totalorder %s14, 1
    %p74 = por %p72, %p73
    %p75 = scmp.ne.s32.totalorder %s66, %s67
    %p76 = scmp.eq.s32.totalorder %s14, 0
    %p77 = por %p75, %p76
    %p78 = scmp.ne.s32.totalorder %s66, %s67
    %p79 = scmp.eq.s32.totalorder %s15, 1
    %p80 = por %p78, %p79
    %p82 = scmp.ne.s32.totalorder %s67, %s81
    %p83 = scmp.eq.s32.totalorder %s15, 0
    %p84 = por %p82, %p83
    %s85 = ssub.s32 %s9, %s16
    %p86 = scmp.eq.s32.totalorder %s85, 0
    %s88 = sadd.s32 %s87, 1
    %s89 = scalar_select %p86, %s87, %s88
    %p92 = pneg %p86
    %p93 = scmp.eq.s32.totalorder %s9, 1
    %p94 = por %p92, %p93
    %p95 = scmp.ne.s32.totalorder %s87, %s90
    %p96 = scmp.eq.s32.totalorder %s9, 0
    %p97 = por %p95, %p96
    %p98 = scmp.ne.s32.totalorder %s87, %s90
    %p99 = scmp.eq.s32.totalorder %s14, 1
    %p100 = por %p98, %p99
    %p101 = scmp.ne.s32.totalorder %s90, %s91
    %p102 = scmp.eq.s32.totalorder %s14, 0
    %p103 = por %p101, %p102
    %p104 = scmp.ne.s32.totalorder %s90, %s91
    %p105 = scmp.eq.s32.totalorder %s15, 1
    %p106 = por %p104, %p105
    %p108 = scmp.ne.s32.totalorder %s91, %s107
    %p109 = scmp.eq.s32.totalorder %s15, 0
    %p110 = por %p108, %p109
    %p111 = scmp.le.s32.totalorder 1, %s9
    %p112 = scmp.lt.s32.totalorder %s9, 3
    %p113 = pnand %p111, %p112
    %p114 = pneg %p113
    // Predicated region
    $region9: #{conv1d_relu.1} parent=5 // pred_check
      _
    $region10: #{conv1d_relu.1} parent=5 // pred_check_branch
      %116 = sbr.rel (%p113) target = $region12
    $region11: #{conv1d_relu.1} parent=5 // pred_region
      %s117 = ssub.s32 %s9, 1
      // Predicated region
      $region13: #{conv1d_relu.1} parent=11 // pred_check
        %p118 = pneg %p56
      $region14: #{conv1d_relu.1} parent=11 // pred_check_branch
        %120 = sbr.rel (%p118) target = $region16
      $region15: #{conv1d_relu.1} parent=11 // pred_region
        _
      $region16: #{conv1d_relu.1} parent=11 // pred_fallthru
        _
      // Predicated region
      $region17: #{conv1d_relu.1} parent=11 // pred_check
        %p121 = pneg %p77
      $region18: #{conv1d_relu.1} parent=11 // pred_check_branch
        %123 = sbr.rel (%p121) target = $region20
      $region19: #{conv1d_relu.1} parent=11 // pred_region
        _
      $region20: #{conv1d_relu.1} parent=11 // pred_fallthru
        _
    $region12: #{conv1d_relu.1} parent=5 // pred_fallthru
      _
    %p124 = scmp.lt.s32.totalorder %s9, 2
    // Predicated region
    $region21: #{conv1d_relu.1} parent=5 // pred_check
      %p125 = pneg %p124
    $region22: #{conv1d_relu.1} parent=5 // pred_check_branch
      %127 = sbr.rel (%p125) target = $region24
    $region23: #{conv1d_relu.1} parent=5 // pred_region
      // Predicated region
      $region25: #{conv1d_relu.1} parent=23 // pred_check
        %p128 = pneg %p29
      $region26: #{conv1d_relu.1} parent=23 // pred_check_branch
        %130 = sbr.rel (%p128) target = $region28
      $region27: #{conv1d_relu.1} parent=23 // pred_region
        %p131 = scmp.lt.s32.totalorder %s9, 1
        %s132 = scalar_select %p131, %s9, 1
        %s133 = smul.addr %s132, 4
        %s134 = scalar_lea.vmem %s0, %s133
      $region28: #{conv1d_relu.1} parent=23 // pred_fallthru
        _
    $region24: #{conv1d_relu.1} parent=5 // pred_fallthru
      _
    %p135 = scmp.le.s32.totalorder 1, %s9
    %p136 = scmp.lt.s32.totalorder %s9, 3
    %p137 = pnand %p135, %p136
    %p138 = pneg %p137
    // Predicated region
    $region29: #{conv1d_relu.1} parent=5 // pred_check
      _
    $region30: #{conv1d_relu.1} parent=5 // pred_check_branch
      %140 = sbr.rel (%p137) target = $region32
    $region31: #{conv1d_relu.1} parent=5 // pred_region
      %s141 = ssub.s32 %s9, 1
      %p142 = scmp.lt.s32.totalorder %s14, 1
      %s143 = scalar_select %p142, %s14, 1
      %s144 = smul.addr %s143, 4
      %s145 = scalar_lea.vmem %s0, %s144
      %p146 = pneg %p35
      %p147 = pneg %p32
      %p148 = pneg %p56
      %p149 = pneg %p53
      %p150 = pneg %p77
      %p151 = pneg %p74
      %p152 = pneg %p103
      %p153 = pneg %p100
      %p154 = scmp.lt.s32.totalorder %s14, 1
      %s155 = scalar_select %p154, %s14, 1
      %s156 = smul.addr %s155, 4
      %s157 = scalar_lea.vmem %s3, %s156
      %p158 = scmp.lt.s32.totalorder %s14, 1
      %s159 = scalar_select %p158, %s14, 1
      %s160 = smul.addr %s159, 4
      %s161 = scalar_lea.vmem %s0, %s160
      %p162 = scmp.lt.s32.totalorder %s14, 1
      %s163 = scalar_select %p162, %s14, 1
      %s164 = smul.addr %s163, 4
      %s165 = scalar_lea.vmem %s3, %s164
      %v166 = vld [vmem:[%s161] sm:$0xf]
      %v167 = vld [vmem:[%s1] sm:$0x7]
      %s168 = scalar_lea.vmem %s1, 4
      %v169 = vld [vmem:[%s168] sm:$0x7]
      %171 = vrot.lane.b32.xlu0 %v166, 127
      %v172 = vpop.permute.xlu0 %171
      %vm173 = vcmask 31744
      %v175 = vsel %vm173, %v169, 0
      %vm177 = vcmask 1043456
      %v178 = vsel %vm177, %v172, 0
      %180 = vmatprep.subr.mxu0 0.0
      %181 = vmatpush1.msra.mxu0 %v178
      %182 = vmatprep.subr.mxu0 0.0
      %183 = vmatpush1.msra.mxu0 0.0
      %184 = vmatprep.subr.mxu0 0.0
      %185 = vmatpush1.msra.mxu0 0.0
      %186 = vmatprep.subr.mxu0 0.0
      %187 = vmatpush1.msra.mxu0 0.0
      %188 = vmatprep.subr.mxu0 0.0
      %189 = vmatpush1.msra.mxu0 0.0
      %190 = vmatprep.subr.mxu0 0.0
      %191 = vmatpush1.msra.mxu0 0.0
      %192 = vmatprep.subr.mxu0 0.0
      %193 = vmatpush1.msra.mxu0 0.0
      %194 = vmatprep.subr.mxu0 0.0
      %195 = vmatpush1.msra.mxu0 0.0
      %196 = vmatprep.subr.mxu0 0.0
      %197 = vmatpush1.msra.mxu0 0.0
      %198 = vmatprep.subr.mxu0 0.0
      %199 = vmatpush1.msra.mxu0 0.0
      %200 = vmatprep.subr.mxu0 0.0
      %201 = vmatpush1.msra.mxu0 0.0
      %202 = vmatprep.subr.mxu0 0.0
      %203 = vmatpush1.msra.mxu0 0.0
      %204 = vmatprep.subr.mxu0 0.0
      %205 = vmatpush1.msra.mxu0 0.0
      %206 = vmatprep.subr.mxu0 0.0
      %207 = vmatpush1.msra.mxu0 0.0
      %208 = vmatprep.subr.mxu0 0.0
      %209 = vmatpush1.msra.mxu0 0.0
      %210 = vmatprep.subr.mxu0 0.0
      %211 = vmatpush1.msra.mxu0 0.0
      %212 = vmatprep.subr.mxu0 0.0
      %213 = vmatpush1.msra.mxu0 0.0
      %214 = vmatprep.subr.mxu0 0.0
      %215 = vmatpush1.msra.mxu0 0.0
      %216 = vmatprep.subr.mxu0 0.0
      %217 = vmatpush1.msra.mxu0 0.0
      %218 = vmatprep.subr.mxu0 0.0
      %219 = vmatpush1.msra.mxu0 0.0
      %220 = vmatprep.subr.mxu0 0.0
      %221 = vmatpush1.msra.mxu0 0.0
      %222 = vmatprep.subr.mxu0 0.0
      %223 = vmatpush1.msra.mxu0 0.0
      %224 = vmatprep.subr.mxu0 0.0
      %225 = vmatpush1.msra.mxu0 0.0
      %226 = vmatprep.subr.mxu0 0.0
      %227 = vmatpush1.msra.mxu0 0.0
      %228 = vmatprep.subr.mxu0 0.0
      %229 = vmatpush1.msra.mxu0 0.0
      %230 = vmatprep.subr.mxu0 0.0
      %231 = vmatpush1.msra.mxu0 0.0
      %232 = vmatprep.subr.mxu0 0.0
      %233 = vmatpush1.msra.mxu0 0.0
      %234 = vmatprep.subr.mxu0 0.0
      %235 = vmatpush1.msra.mxu0 0.0
      %236 = vmatprep.subr.mxu0 0.0
      %237 = vmatpush1.msra.mxu0 0.0
      %238 = vmatprep.subr.mxu0 0.0
      %239 = vmatpush1.msra.mxu0 0.0
      %240 = vmatprep.subr.mxu0 0.0
      %241 = vmatpush1.msra.mxu0 0.0
      %242 = vmatprep.subr.mxu0 0.0
      %243 = vmatpush1.msra.mxu0 0.0
      %244 = vmatprep.mubr.f32.mxu0 0.0
      %245 = vmatmul.mubr.f32.gmra.mrb[0].mxu0 %v175
      %v246 = vpop.f32.mrb[0].mxu0
      %v247 = vadd.f32 0.0, %v246
      %v248 = vpop.f32.mrb[0].mxu0
      %249 = vdwg.mxu0
      %v251 = vsel %vm173, %v167, 0
      %v253 = vsel %vm177, %v166, 0
      %255 = vmatprep.subr.mxu0 0.0
      %256 = vmatpush1.msra.mxu0 %v253
      %257 = vmatprep.subr.mxu0 0.0
      %258 = vmatpush1.msra.mxu0 0.0
      %259 = vmatprep.subr.mxu0 0.0
      %260 = vmatpush1.msra.mxu0 0.0
      %261 = vmatprep.subr.mxu0 0.0
      %262 = vmatpush1.msra.mxu0 0.0
      %263 = vmatprep.subr.mxu0 0.0
      %264 = vmatpush1.msra.mxu0 0.0
      %265 = vmatprep.subr.mxu0 0.0
      %266 = vmatpush1.msra.mxu0 0.0
      %267 = vmatprep.subr.mxu0 0.0
      %268 = vmatpush1.msra.mxu0 0.0
      %269 = vmatprep.subr.mxu0 0.0
      %270 = vmatpush1.msra.mxu0 0.0
      %271 = vmatprep.subr.mxu0 0.0
      %272 = vmatpush1.msra.mxu0 0.0
      %273 = vmatprep.subr.mxu0 0.0
      %274 = vmatpush1.msra.mxu0 0.0
      %275 = vmatprep.subr.mxu0 0.0
      %276 = vmatpush1.msra.mxu0 0.0
      %277 = vmatprep.subr.mxu0 0.0
      %278 = vmatpush1.msra.mxu0 0.0
      %279 = vmatprep.subr.mxu0 0.0
      %280 = vmatpush1.msra.mxu0 0.0
      %281 = vmatprep.subr.mxu0 0.0
      %282 = vmatpush1.msra.mxu0 0.0
      %283 = vmatprep.subr.mxu0 0.0
      %284 = vmatpush1.msra.mxu0 0.0
      %285 = vmatprep.subr.mxu0 0.0
      %286 = vmatpush1.msra.mxu0 0.0
      %287 = vmatprep.subr.mxu0 0.0
      %288 = vmatpush1.msra.mxu0 0.0
      %289 = vmatprep.subr.mxu0 0.0
      %290 = vmatpush1.msra.mxu0 0.0
      %291 = vmatprep.subr.mxu0 0.0
      %292 = vmatpush1.msra.mxu0 0.0
      %293 = vmatprep.subr.mxu0 0.0
      %294 = vmatpush1.msra.mxu0 0.0
      %295 = vmatprep.subr.mxu0 0.0
      %296 = vmatpush1.msra.mxu0 0.0
      %297 = vmatprep.subr.mxu0 0.0
      %298 = vmatpush1.msra.mxu0 0.0
      %299 = vmatprep.subr.mxu0 0.0
      %300 = vmatpush1.msra.mxu0 0.0
      %301 = vmatprep.subr.mxu0 0.0
      %302 = vmatpush1.msra.mxu0 0.0
      %303 = vmatprep.subr.mxu0 0.0
      %304 = vmatpush1.msra.mxu0 0.0
      %305 = vmatprep.subr.mxu0 0.0
      %306 = vmatpush1.msra.mxu0 0.0
      %307 = vmatprep.subr.mxu0 0.0
      %308 = vmatpush1.msra.mxu0 0.0
      %309 = vmatprep.subr.mxu0 0.0
      %310 = vmatpush1.msra.mxu0 0.0
      %311 = vmatprep.subr.mxu0 0.0
      %312 = vmatpush1.msra.mxu0 0.0
      %313 = vmatprep.subr.mxu0 0.0
      %314 = vmatpush1.msra.mxu0 0.0
      %315 = vmatprep.subr.mxu0 0.0
      %316 = vmatpush1.msra.mxu0 0.0
      %317 = vmatprep.subr.mxu0 0.0
      %318 = vmatpush1.msra.mxu0 0.0
      %319 = vmatprep.mubr.f32.mxu0 0.0
      %320 = vmatmul.mubr.f32.gmra.mrb[0].mxu0 %v251
      %v321 = vpop.f32.mrb[0].mxu0
      %v322 = vadd.f32 %v247, %v321
      %v323 = vpop.f32.mrb[0].mxu0
      %324 = vdwg.mxu0
      %s325 = scalar_lea.vmem %s1, 8
      %v326 = vld [vmem:[%s325] sm:$0x7]
      %327 = vrot.lane.b32.xlu0 %v166, 126
      %v328 = vpop.permute.xlu0 %327
      %v330 = vsel %vm173, %v326, 0
      %v332 = vsel %vm177, %v328, 0
      %334 = vmatprep.subr.mxu0 0.0
      %335 = vmatpush1.msra.mxu0 %v332
      %336 = vmatprep.subr.mxu0 0.0
      %337 = vmatpush1.msra.mxu0 0.0
      %338 = vmatprep.subr.mxu0 0.0
      %339 = vmatpush1.msra.mxu0 0.0
      %340 = vmatprep.subr.mxu0 0.0
      %341 = vmatpush1.msra.mxu0 0.0
      %342 = vmatprep.subr.mxu0 0.0
      %343 = vmatpush1.msra.mxu0 0.0
      %344 = vmatprep.subr.mxu0 0.0
      %345 = vmatpush1.msra.mxu0 0.0
      %346 = vmatprep.subr.mxu0 0.0
      %347 = vmatpush1.msra.mxu0 0.0
      %348 = vmatprep.subr.mxu0 0.0
      %349 = vmatpush1.msra.mxu0 0.0
      %350 = vmatprep.subr.mxu0 0.0
      %351 = vmatpush1.msra.mxu0 0.0
      %352 = vmatprep.subr.mxu0 0.0
      %353 = vmatpush1.msra.mxu0 0.0
      %354 = vmatprep.subr.mxu0 0.0
      %355 = vmatpush1.msra.mxu0 0.0
      %356 = vmatprep.subr.mxu0 0.0
      %357 = vmatpush1.msra.mxu0 0.0
      %358 = vmatprep.subr.mxu0 0.0
      %359 = vmatpush1.msra.mxu0 0.0
      %360 = vmatprep.subr.mxu0 0.0
      %361 = vmatpush1.msra.mxu0 0.0
      %362 = vmatprep.subr.mxu0 0.0
      %363 = vmatpush1.msra.mxu0 0.0
      %364 = vmatprep.subr.mxu0 0.0
      %365 = vmatpush1.msra.mxu0 0.0
      %366 = vmatprep.subr.mxu0 0.0
      %367 = vmatpush1.msra.mxu0 0.0
      %368 = vmatprep.subr.mxu0 0.0
      %369 = vmatpush1.msra.mxu0 0.0
      %370 = vmatprep.subr.mxu0 0.0
      %371 = vmatpush1.msra.mxu0 0.0
      %372 = vmatprep.subr.mxu0 0.0
      %373 = vmatpush1.msra.mxu0 0.0
      %374 = vmatprep.subr.mxu0 0.0
      %375 = vmatpush1.msra.mxu0 0.0
      %376 = vmatprep.subr.mxu0 0.0
      %377 = vmatpush1.msra.mxu0 0.0
      %378 = vmatprep.subr.mxu0 0.0
      %379 = vmatpush1.msra.mxu0 0.0
      %380 = vmatprep.subr.mxu0 0.0
      %381 = vmatpush1.msra.mxu0 0.0
      %382 = vmatprep.subr.mxu0 0.0
      %383 = vmatpush1.msra.mxu0 0.0
      %384 = vmatprep.subr.mxu0 0.0
      %385 = vmatpush1.msra.mxu0 0.0
      %386 = vmatprep.subr.mxu0 0.0
      %387 = vmatpush1.msra.mxu0 0.0
      %388 = vmatprep.subr.mxu0 0.0
      %389 = vmatpush1.msra.mxu0 0.0
      %390 = vmatprep.subr.mxu0 0.0
      %391 = vmatpush1.msra.mxu0 0.0
      %392 = vmatprep.subr.mxu0 0.0
      %393 = vmatpush1.msra.mxu0 0.0
      %394 = vmatprep.subr.mxu0 0.0
      %395 = vmatpush1.msra.mxu0 0.0
      %396 = vmatprep.subr.mxu0 0.0
      %397 = vmatpush1.msra.mxu0 0.0
      %398 = vmatprep.mubr.f32.mxu0 0.0
      %399 = vmatmul.mubr.f32.gmra.mrb[0].mxu0 %v330
      %v400 = vpop.f32.mrb[0].mxu0
      %v401 = vadd.f32 0.0, %v400
      %v402 = vpop.f32.mrb[0].mxu0
      %403 = vdwg.mxu0
      %v404 = vadd.f32 %v322, %v401
      %v405 = vld [vmem:[%s2] sm:$0x7]
      %407 = vset.pattern.permute.xlu0 0
      %408 = vperm.xlu0 %407, %v405
      %v409 = vpop.permute.xlu0 %408
      %v411 = vadd.f32 %v404, %v409
      %v412 = vmax.f32 %v411, 0.0
      %vm413 = vcmask 108544
      %414 = vst.msk [vmem:[%s165] sm:$0x7] %vm413, %v412
      %p415 = scmp.lt.s32.totalorder %s14, 1
      %s416 = scalar_select %p415, %s14, 1
      %s417 = smul.addr %s416, 4
      %s418 = scalar_lea.vmem %s3, %s417
      // Predicated region
      $region33: #{conv1d_relu.1} parent=31 // pred_check
        %p419 = pneg %p100
      $region34: #{conv1d_relu.1} parent=31 // pred_check_branch
        %421 = sbr.rel (%p419) target = $region36
      $region35: #{conv1d_relu.1} parent=31 // pred_region
        _
      $region36: #{conv1d_relu.1} parent=31 // pred_fallthru
        _
    $region32: #{conv1d_relu.1} parent=5 // pred_fallthru
      _
    %p422 = scmp.le.s32.totalorder 2, %s9
    // Predicated region
    $region37: #{conv1d_relu.1} parent=5 // pred_check
      %p423 = pneg %p422
    $region38: #{conv1d_relu.1} parent=5 // pred_check_branch
      %425 = sbr.rel (%p423) target = $region40
    $region39: #{conv1d_relu.1} parent=5 // pred_region
      %s426 = ssub.s32 %s9, 2
      // Predicated region
      $region41: #{conv1d_relu.1} parent=39 // pred_check
        %p427 = pneg %p106
      $region42: #{conv1d_relu.1} parent=39 // pred_check_branch
        %429 = sbr.rel (%p427) target = $region44
      $region43: #{conv1d_relu.1} parent=39 // pred_region
        %p430 = scmp.lt.s32.totalorder %s15, 1
        %s431 = scalar_select %p430, %s15, 1
        %s432 = smul.addr %s431, 4
        %s433 = scalar_lea.vmem %s3, %s432
      $region44: #{conv1d_relu.1} parent=39 // pred_fallthru
        _
    $region40: #{conv1d_relu.1} parent=5 // pred_fallthru
      _
  $region6: #{conv1d_relu.1} parent=0 // loop_footer
    %s13 = sadd.s32 1, %s9
  $region7: #{conv1d_relu.1} parent=0 // loop_footer_branch
    %8 = sbr.rel target = $region3
  $region8: #{conv1d_relu.1} parent=0 // loop_exit
    _

</llo_original>
